<compile_context>
chip_gen: v7x
topology: tpu7x:2x2x1
jax: 0.10.0
libtpu: 0.0.40
codegen_flags: <defaults>
</compile_context>

<pallas_src>
import functools

import jax
import jax.numpy as jnp
from jax import lax
from jax.experimental import pallas as pl
from jax.experimental.pallas import tpu as pltpu


def _attention_kernel(hproj_ref, enc_ref, we_ref, v_ref, ctx_ref, wts_ref,
                      *, approx_recip):
    # hproj_ref: (TB, H)     precomputed hidden @ Wh^T + bias   (f32)
    # enc_ref:   (TB, S, H)  encoder outputs for this tile      (f32 or bf16)
    # we_ref:    (H, H)      W_attn[:, H:]^T                    (same as enc)
    # v_ref:     (1, H)      v weight as a row                  (f32)
    # ctx_ref:   (TB, H)     context output (lane-dense 2D)
    # wts_ref:   (TB, S)     attention-weight output
    enc = enc_ref[...]                                           # (TB, S, H)
    hproj = hproj_ref[...]                                       # (TB, H)
    v = v_ref[...]                                               # (1, H)

    # energy = tanh(enc @ We^T + (h @ Wh^T + b)) — single MXU contraction per
    # tile; dot_general contracts dim 2 of (TB,S,H) with dim 0 of (H,H) so
    # Mosaic flattens the leading dims itself (no reshape -> no VMEM copy).
    e_proj = lax.dot_general(
        enc, we_ref[...],
        dimension_numbers=(((2,), (0,)), ((), ())),
        preferred_element_type=jnp.float32)                      # (TB, S, H) f32
    energy = jnp.tanh(e_proj + hproj[:, None, :])                # (TB, S, H)

    # scores = energy . v  -> VPU multiply + lane reduce (no N=1 matmul).
    scores = jnp.sum(energy * v[None, :, :], axis=-1)            # (TB, S)

    # softmax over the sequence axis (last axis -> lanes).
    m = jnp.max(scores, axis=-1, keepdims=True)                  # (TB, 1)
    p = jnp.exp(scores - m)                                      # (TB, S)
    denom = jnp.sum(p, axis=-1, keepdims=True)                   # (TB, 1)
    w = p * pl.reciprocal(denom, approx=approx_recip)            # (TB, S)

    # context = sum_s w * enc  -> VPU broadcast multiply + sublane reduce;
    # keeps the MXU free for the main projection.
    ctx = jnp.sum(w[:, :, None] * enc.astype(jnp.float32), axis=1)  # (TB, H)

    ctx_ref[...] = ctx.astype(ctx_ref.dtype)
    wts_ref[...] = w.astype(wts_ref.dtype)


def _vmem_capacity_bytes():
    try:
        return int(pltpu.get_tpu_info().vmem_capacity_bytes)
    except Exception:
        return 64 * 1024 * 1024          # conservative: v7x per-core figure


def _round_up(x, m):
    return ((x + m - 1) // m) * m


def attention_forward(hidden, encoder_outputs, attn_w, attn_b, v_w,
                      *, tb_cap=512, use_bf16_matmul=True):
    """
    hidden:          (B, H)    float32
    encoder_outputs: (B, S, H) float32
    attn_w:          (H, 2H)   nn.Linear(hidden*2, hidden).weight
    attn_b:          (H,)      nn.Linear bias
    v_w:             (1, H)    nn.Linear(hidden, 1, bias=False).weight
    returns (context (B,1,H), attention_weights (B,S))

    use_bf16_matmul=True casts enc / We to bf16 for the MXU projection (f32
    accumulation; tanh/softmax/context stay f32) -> ~2x HBM traffic reduction
    and ~3x MXU throughput, matching the f32 reference to ~1e-2.
    use_bf16_matmul=False keeps exact f32 numerics (~1e-6 vs PyTorch).
    """
    B, S, H = encoder_outputs.shape

    # Hoisted hidden projection (single XLA matmul, grid-invariant per row).
    h_proj = (hidden.astype(jnp.float32)
              @ jnp.transpose(attn_w[:, :H]).astype(jnp.float32)
              + attn_b[None, :].astype(jnp.float32))             # (B, H) f32
    we_t = jnp.transpose(attn_w[:, H:])                          # (H, H)
    v_row = v_w.reshape(1, H).astype(jnp.float32)                # (1, H)

    if use_bf16_matmul:
        enc = encoder_outputs.astype(jnp.bfloat16)
        we_t = we_t.astype(jnp.bfloat16)
    else:
        enc = encoder_outputs.astype(jnp.float32)
        we_t = we_t.astype(jnp.float32)
    enc_bytes = jnp.dtype(enc.dtype).itemsize

    # --- generation-aware VMEM / batch-tile sizing ---------------------------
    vmem_cap = _vmem_capacity_bytes()
    # Leave headroom below physical VMEM: ~40 MiB on v7x (64 MiB/TC),
    # ~80 MiB on v5e/v6e (128 MiB).
    vmem_limit = int(min((vmem_cap * 5) // 8, 80 * 1024 * 1024))

    # Total live VMEM per batch row: double-buffered enc DMA tile, ~3 tiles of
    # f32 temporaries (e_proj/energy, w*enc product, slack), plus the small
    # double-buffered hproj / ctx / wts blocks.
    row_bytes = (2 * S * H * enc_bytes
                 + 3 * S * H * 4
                 + 2 * (2 * H * 4 + S * 4))
    fixed_bytes = 2 * (H * H * enc_bytes + H * 4) + (1 << 20)    # weights+slack
    tb = max(1, (vmem_limit - fixed_bytes) // row_bytes)
    tb = min(tb, tb_cap, B)

    # Keep >= 2 (ideally 4) grid steps when the batch is big enough so the
    # "parallel" batch axis can shard across v7x's two TensorCores and the enc
    # DMA still overlaps with compute.
    if B >= 32:
        tb = min(tb, max(8, _round_up((B + 3) // 4, 8)))
    elif B >= 16:
        tb = min(tb, max(8, _round_up((B + 1) // 2, 8)))

    if tb >= B:
        tb = B                                   # block == full batch dim
    else:
        tb = max(8, (tb // 8) * 8)               # sublane-aligned 2D blocks
        # TODO(synk): if even 8 rows exceed the budget (very large S*H), a
        # sequence-tiled variant would be needed; we widen the limit instead.
    needed = fixed_bytes + tb * row_bytes
    if needed > vmem_limit:
        vmem_limit = int(min(needed, max(vmem_cap - (8 << 20), vmem_limit)))

    num_tiles = -(-B // tb)
    Bp = num_tiles * tb

    if Bp != B:
        pad = Bp - B
        h_proj = jnp.concatenate(
            [h_proj, jnp.zeros((pad, H), h_proj.dtype)], axis=0)
        enc = jnp.concatenate(
            [enc, jnp.zeros((pad, S, H), enc.dtype)], axis=0)

    grid_spec = pltpu.PrefetchScalarGridSpec(
        num_scalar_prefetch=0,
        grid=(num_tiles,),
        in_specs=[
            pl.BlockSpec((tb, H), lambda b: (b, 0)),        # hidden projection
            pl.BlockSpec((tb, S, H), lambda b: (b, 0, 0)),  # encoder outputs
            pl.BlockSpec((H, H), lambda b: (0, 0)),         # We^T (invariant)
            pl.BlockSpec((1, H), lambda b: (0, 0)),         # v row (invariant)
        ],
        out_specs=[
            pl.BlockSpec((tb, H), lambda b: (b, 0)),        # context (2D)
            pl.BlockSpec((tb, S), lambda b: (b, 0)),        # weights
        ],
    )

    flops = 2 * Bp * S * H * H + 8 * Bp * S * H
    transcendentals = Bp * S * H + Bp * S
    bytes_accessed = (enc_bytes * (Bp * S * H + H * H)            # enc + We
                      + 4 * (Bp * H + H                           # hproj + v
                             + Bp * H + Bp * S))                  # outputs

    kernel = functools.partial(_attention_kernel,
                               approx_recip=bool(use_bf16_matmul))

    context2d, weights = pl.pallas_call(
        kernel,
        out_shape=(
            jax.ShapeDtypeStruct((Bp, H), jnp.float32),
            jax.ShapeDtypeStruct((Bp, S), jnp.float32),
        ),
        grid_spec=grid_spec,
        compiler_params=pltpu.CompilerParams(
            dimension_semantics=("parallel",),
            vmem_limit_bytes=vmem_limit,
        ),
        cost_estimate=pl.CostEstimate(
            flops=flops,
            transcendentals=transcendentals,
            bytes_accessed=bytes_accessed,
        ),
    )(h_proj, enc, we_t, v_row)

    if Bp != B:
        context2d = context2d[:B]
        weights = weights[:B]
    return context2d[:, None, :], weights


def _reference(hidden, encoder_outputs, attn_w, attn_b, v_w):
    B, S, H = encoder_outputs.shape
    h_rep = jnp.repeat(hidden[:, None, :], S, axis=1)               # (B, S, H)
    cat = jnp.concatenate([h_rep, encoder_outputs], axis=2)         # (B, S, 2H)
    energy = jnp.tanh(jnp.einsum("bsk,hk->bsh", cat, attn_w) + attn_b)
    scores = jnp.einsum("bsh,oh->bso", energy, v_w)[..., 0]         # (B, S)
    weights = jax.nn.softmax(scores, axis=1)
    context = jnp.einsum("bs,bsh->bh", weights, encoder_outputs)[:, None, :]
    return context, weights


if __name__ == "__main__":
    B, S, H = 2, 8, 32

    key = jax.random.PRNGKey(0)
    k1, k2, k3, k4, k5 = jax.random.split(key, 5)

    hidden = jax.random.normal(k1, (B, H), dtype=jnp.float32)
    encoder_outputs = jax.random.normal(k2, (B, S, H), dtype=jnp.float32)

    # Deterministic parameter init (PyTorch-style uniform(-1/sqrt(fan_in), +))
    bound_attn = 1.0 / jnp.sqrt(jnp.float32(2 * H))
    bound_v = 1.0 / jnp.sqrt(jnp.float32(H))
    attn_w = jax.random.uniform(k3, (H, 2 * H), jnp.float32,
                                -bound_attn, bound_attn)
    attn_b = jax.random.uniform(k4, (H,), jnp.float32,
                                -bound_attn, bound_attn)
    v_w = jax.random.uniform(k5, (1, H), jnp.float32, -bound_v, bound_v)

    ctx_ref, wts_ref = _reference(hidden, encoder_outputs, attn_w, attn_b, v_w)

    # Exact-semantics path (f32 everywhere) — matches PyTorch to ~1e-6.
    ctx32, wts32 = attention_forward(hidden, encoder_outputs, attn_w, attn_b,
                                     v_w, use_bf16_matmul=False)
    jax.block_until_ready((ctx32, wts32))
    assert jnp.allclose(ctx32, ctx_ref, atol=1e-5, rtol=1e-5), "ctx f32 mismatch"
    assert jnp.allclose(wts32, wts_ref, atol=1e-5, rtol=1e-5), "wts f32 mismatch"

    # Default fast path (bf16 MXU operands, f32 accumulation / softmax).
    ctx_bf, wts_bf = attention_forward(hidden, encoder_outputs, attn_w, attn_b,
                                       v_w)
    jax.block_until_ready((ctx_bf, wts_bf))
    assert jnp.allclose(ctx_bf, ctx_ref, atol=5e-2, rtol=5e-2), "ctx bf16 mismatch"
    assert jnp.allclose(wts_bf, wts_ref, atol=5e-2, rtol=5e-2), "wts bf16 mismatch"

    print("KERNEL_OK")
</pallas_src>

<mosaic_0001>
module attributes {stable_mosaic.version = 11 : i64} {
  func.func @_attention_kernel(%arg0: i32, %arg1: memref<2x32xf32, #tpu.memory_space<vmem>>, %arg2: memref<2x8x32xf32, #tpu.memory_space<vmem>>, %arg3: memref<32x32xf32, #tpu.memory_space<vmem>>, %arg4: memref<1x32xf32, #tpu.memory_space<vmem>>, %arg5: memref<2x32xf32, #tpu.memory_space<vmem>>, %arg6: memref<2x8xf32, #tpu.memory_space<vmem>>) attributes {dimension_semantics = [#tpu.dimension_semantics<parallel>], iteration_bounds = array<i64: 1>, scalar_prefetch = 0 : i64, scratch_operands = 0 : i64, tpu.core_type = #tpu.core_type<tc>, window_params = [{transform_indices = @transform_0, window_bounds = array<i64: 2, 32>}, {transform_indices = @transform_1, window_bounds = array<i64: 2, 8, 32>}, {pipeline_mode = #tpu.pipeline_mode<synchronous>, transform_indices = @transform_2, window_bounds = array<i64: 32, 32>}, {pipeline_mode = #tpu.pipeline_mode<synchronous>, transform_indices = @transform_3, window_bounds = array<i64: 1, 32>}, {transform_indices = @transform_4, window_bounds = array<i64: 2, 32>}, {transform_indices = @transform_5, window_bounds = array<i64: 2, 8>}]} {
    %c0 = arith.constant 0 : index
    %c0_0 = arith.constant 0 : index
    %c0_1 = arith.constant 0 : index
    %0 = vector.load %arg2[%c0, %c0_0, %c0_1] : memref<2x8x32xf32, #tpu.memory_space<vmem>>, vector<2x8x32xf32>
    %c0_2 = arith.constant 0 : index
    %c0_3 = arith.constant 0 : index
    %1 = vector.load %arg1[%c0_2, %c0_3] : memref<2x32xf32, #tpu.memory_space<vmem>>, vector<2x32xf32>
    %c0_4 = arith.constant 0 : index
    %c0_5 = arith.constant 0 : index
    %2 = vector.load %arg4[%c0_4, %c0_5] : memref<1x32xf32, #tpu.memory_space<vmem>>, vector<1x32xf32>
    %c0_6 = arith.constant 0 : index
    %c0_7 = arith.constant 0 : index
    %3 = vector.load %arg3[%c0_6, %c0_7] : memref<32x32xf32, #tpu.memory_space<vmem>>, vector<32x32xf32>
    %cst = arith.constant dense<0.000000e+00> : vector<2x8x32xf32>
    %4 = tpu.matmul %0, %3, %cst {dimension_numbers = #tpu.dot_dimension_numbers<[2], [0], [0, 1], [1], [0, 0, 0, 1, 1, 1], [], []>} : vector<2x8x32xf32>, vector<32x32xf32>, vector<2x8x32xf32> -> vector<2x8x32xf32>
    %5 = vector.shape_cast %1 : vector<2x32xf32> to vector<2x1x32xf32>
    %6 = vector.broadcast %5 : vector<2x1x32xf32> to vector<2x8x32xf32>
    %7 = arith.addf %4, %6 : vector<2x8x32xf32>
    %8 = math.tanh %7 : vector<2x8x32xf32>
    %9 = vector.shape_cast %2 : vector<1x32xf32> to vector<1x1x32xf32>
    %10 = vector.broadcast %9 : vector<1x1x32xf32> to vector<2x8x32xf32>
    %11 = arith.mulf %8, %10 : vector<2x8x32xf32>
    %cst_8 = arith.constant dense<0.000000e+00> : vector<2x8xf32>
    %12 = vector.multi_reduction <add>, %11, %cst_8 [2] : vector<2x8x32xf32> to vector<2x8xf32>
    %cst_9 = arith.constant dense<0xFF800000> : vector<2xf32>
    %13 = vector.multi_reduction <maximumf>, %12, %cst_9 [1] : vector<2x8xf32> to vector<2xf32>
    %14 = vector.shape_cast %13 : vector<2xf32> to vector<2x1xf32>
    %15 = vector.broadcast %14 : vector<2x1xf32> to vector<2x8xf32>
    %16 = arith.subf %12, %15 : vector<2x8xf32>
    %17 = math.exp %16 : vector<2x8xf32>
    %cst_10 = arith.constant dense<0.000000e+00> : vector<2xf32>
    %18 = vector.multi_reduction <add>, %17, %cst_10 [1] : vector<2x8xf32> to vector<2xf32>
    %19 = vector.shape_cast %18 : vector<2xf32> to vector<2x1xf32>
    %20 = tpu.reciprocal %19 : vector<2x1xf32> -> vector<2x1xf32>
    %21 = vector.broadcast %20 : vector<2x1xf32> to vector<2x8xf32>
    %22 = arith.mulf %17, %21 : vector<2x8xf32>
    %23 = vector.shape_cast %22 : vector<2x8xf32> to vector<2x8x1xf32>
    %24 = vector.broadcast %23 : vector<2x8x1xf32> to vector<2x8x32xf32>
    %25 = arith.mulf %24, %0 : vector<2x8x32xf32>
    %cst_11 = arith.constant dense<0.000000e+00> : vector<2x32xf32>
    %26 = vector.multi_reduction <add>, %25, %cst_11 [1] : vector<2x8x32xf32> to vector<2x32xf32>
    %c0_12 = arith.constant 0 : index
    %c0_13 = arith.constant 0 : index
    %27 = vector.load %arg5[%c0_12, %c0_13] : memref<2x32xf32, #tpu.memory_space<vmem>>, vector<2x32xf32>
    tpu.vector_store %arg5[%c0_12, %c0_13], %26 {strides = array<i32>} : memref<2x32xf32, #tpu.memory_space<vmem>>, vector<2x32xf32>,
    %c0_14 = arith.constant 0 : index
    %c0_15 = arith.constant 0 : index
    %28 = vector.load %arg6[%c0_14, %c0_15] : memref<2x8xf32, #tpu.memory_space<vmem>>, vector<2x8xf32>
    tpu.vector_store %arg6[%c0_14, %c0_15], %22 {strides = array<i32>} : memref<2x8xf32, #tpu.memory_space<vmem>>, vector<2x8xf32>,
    return
  }
  func.func @transform_0(%arg0: i32) -> (i32, i32) {
    %c0_i32 = arith.constant 0 : i32
    %c0_i32_0 = arith.constant 0 : i32
    return %arg0, %c0_i32 : i32, i32
  }
  func.func @transform_1(%arg0: i32) -> (i32, i32, i32) {
    %c0_i32 = arith.constant 0 : i32
    %c0_i32_0 = arith.constant 0 : i32
    %c0_i32_1 = arith.constant 0 : i32
    return %arg0, %c0_i32, %c0_i32_0 : i32, i32, i32
  }
  func.func @transform_2(%arg0: i32) -> (i32, i32) {
    %c0_i32 = arith.constant 0 : i32
    %c0_i32_0 = arith.constant 0 : i32
    %c0_i32_1 = arith.constant 0 : i32
    return %c0_i32, %c0_i32_0 : i32, i32
  }
  func.func @transform_3(%arg0: i32) -> (i32, i32) {
    %c0_i32 = arith.constant 0 : i32
    %c0_i32_0 = arith.constant 0 : i32
    %c0_i32_1 = arith.constant 0 : i32
    return %c0_i32, %c0_i32_0 : i32, i32
  }
  func.func @transform_4(%arg0: i32) -> (i32, i32) {
    %c0_i32 = arith.constant 0 : i32
    %c0_i32_0 = arith.constant 0 : i32
    return %arg0, %c0_i32 : i32, i32
  }
  func.func @transform_5(%arg0: i32) -> (i32, i32) {
    %c0_i32 = arith.constant 0 : i32
    %c0_i32_0 = arith.constant 0 : i32
    return %arg0, %c0_i32 : i32, i32
  }
}

</mosaic_0001>

<llo_original>
// kernel: tpu_custom_call.1
$region0: #{tpu_custom_call.1}
  #allocation0 [shape = 'u32[]', space=smem, size = 0x4, offset = 0x4, fixed_abs, tag = 'smem constant byte address 0x4 - core index']
  #allocation1 [shape = 'u32[144,128]{1,0:T(1,128)}', space=vmem, size = 0x12000, scoped, tag = 'internal scratch']
  %s0 = inlined_call_operand.hbm [shape: f32[2,32], index: 0, kind: input, shape index: {}]
  %s1 = inlined_call_operand.hbm [shape: f32[2,8,32], index: 1, kind: input, shape index: {}]
  %s2 = inlined_call_operand.hbm [shape: f32[32,32], index: 2, kind: input, shape index: {}]
  %s3 = inlined_call_operand.vmem [shape: f32[1,32], index: 3, kind: input, shape index: {}]
  %s4 = inlined_call_operand.hbm [shape: f32[2,32], index: 4, kind: output, shape index: {0}]
  %s5 = inlined_call_operand.hbm [shape: f32[2,8], index: 5, kind: output, shape index: {1}]
  %6 = xla_tuple %s4, %s5
  %s7 = sld [smem:[#allocation0]]
  $region46: #{tpu_custom_call.1} parent=0
    _
  %s9 = ssub.s32 1, %s7
  %s10 = scalar_select 0, %s9, %s7
  $region1: #{tpu_custom_call.1} parent=0
    #allocation2 [shape = 'u8[1024]{0}', space=vmem, size = 0x400, scoped, tag = 'input window, operand 0, single buffered']
    #allocation3 [shape = 's32[1]{0}', space=sflag, size = 0x4, scoped, tag = 'scoped memory for tpu_custom_call.1']
    #allocation4 [shape = 's32[1]{0}', space=sflag, size = 0x4, scoped, tag = 'scoped memory for tpu_custom_call.1']
    #allocation5 [shape = 'u8[8192]{0}', space=vmem, size = 0x2000, scoped, tag = 'input window, operand 1, single buffered']
    #allocation6 [shape = 's32[1]{0}', space=sflag, size = 0x4, scoped, tag = 'scoped memory for tpu_custom_call.1']
    #allocation7 [shape = 'u8[16384]{0}', space=vmem, size = 0x4000, scoped, tag = 'input window, operand 2, single buffered']
    #allocation8 [shape = 'u8[1024]{0}', space=vmem, size = 0x400, scoped, tag = 'output window, operand 0, single buffered']
    #allocation9 [shape = 'u8[1024]{0}', space=vmem, size = 0x400, scoped, tag = 'output window, operand 1, single buffered']
    #allocation10 [shape = 's32[1]{0}', space=sflag, size = 0x4, scoped, tag = 'scoped memory for tpu_custom_call.1']
    %11 = vsyncpa [#allocation3], 0
    %12 = vsyncpa [#allocation6], 0
    %13 = vsyncpa [#allocation4], 0
    %14 = vsyncpa [#allocation10], 0
    // Predicated region
    $region2: #{tpu_custom_call.1} parent=1 // pred_check
      _
    $region3: #{tpu_custom_call.1} parent=1 // pred_check_branch
      %16 = sbr.rel (0) target = $region5
    $region4: #{tpu_custom_call.1} parent=1 // pred_region
      %s18 = ssub.s32 32, 32
      %19 = vsyncadd [#allocation3], %s18
      %s21 = sshll.u32 [#allocation2], 4
      %s22 = int_to_ptr.vmem [resolvable:$true] %s21
      %24 = dma.hbm_to_vmem [thread:$0]  %s0, 32, %s22, [#allocation3]
    $region5: #{tpu_custom_call.1} parent=1 // pred_fallthru
      _
    // Predicated region
    $region6: #{tpu_custom_call.1} parent=1 // pred_check
      _
    $region7: #{tpu_custom_call.1} parent=1 // pred_check_branch
      %26 = sbr.rel (0) target = $region9
    $region8: #{tpu_custom_call.1} parent=1 // pred_region
      %s28 = ssub.s32 256, 256
      %29 = vsyncadd [#allocation6], %s28
      %s30 = sshll.u32 [#allocation5], 4
      %s31 = int_to_ptr.vmem [resolvable:$true] %s30
      %36 = dma.hbm_to_vmem [thread:$0]  %s1, 256, %s31, [#allocation6], 128, 128, 8
    $region9: #{tpu_custom_call.1} parent=1 // pred_fallthru
      _
    // Predicated region
    $region10: #{tpu_custom_call.1} parent=1 // pred_check
      _
    $region11: #{tpu_custom_call.1} parent=1 // pred_check_branch
      %38 = sbr.rel (0) target = $region13
    $region12: #{tpu_custom_call.1} parent=1 // pred_region
      %s40 = ssub.s32 512, 512
      %41 = vsyncadd [#allocation6], %s40
      %s42 = sshll.u32 [#allocation7], 4
      %s43 = int_to_ptr.vmem [resolvable:$true] %s42
      %48 = dma.hbm_to_vmem [thread:$0]  %s2, 512, %s43, [#allocation6], 128, 128, 8
    $region13: #{tpu_custom_call.1} parent=1 // pred_fallthru
      _
    // Predicated region
    $region14: #{tpu_custom_call.1} parent=1 // pred_check
      _
    $region15: #{tpu_custom_call.1} parent=1 // pred_check_branch
      %50 = sbr.rel (0) target = $region17
    $region16: #{tpu_custom_call.1} parent=1 // pred_region
      _
    $region17: #{tpu_custom_call.1} parent=1 // pred_fallthru
      _
    // Predicated region
    $region18: #{tpu_custom_call.1} parent=1 // pred_check
      _
    $region19: #{tpu_custom_call.1} parent=1 // pred_check_branch
      %52 = sbr.rel (0) target = $region21
    $region20: #{tpu_custom_call.1} parent=1 // pred_region
      %53 = dma.done [#allocation3], 32
    $region21: #{tpu_custom_call.1} parent=1 // pred_fallthru
      _
    // Predicated region
    $region22: #{tpu_custom_call.1} parent=1 // pred_check
      _
    $region23: #{tpu_custom_call.1} parent=1 // pred_check_branch
      %55 = sbr.rel (0) target = $region25
    $region24: #{tpu_custom_call.1} parent=1 // pred_region
      %56 = dma.done [#allocation6], 256
    $region25: #{tpu_custom_call.1} parent=1 // pred_fallthru
      _
    // Predicated region
    $region26: #{tpu_custom_call.1} parent=1 // pred_check
      _
    $region27: #{tpu_custom_call.1} parent=1 // pred_check_branch
      %58 = sbr.rel (0) target = $region29
    $region28: #{tpu_custom_call.1} parent=1 // pred_region
      %59 = dma.done [#allocation6], 512
    $region29: #{tpu_custom_call.1} parent=1 // pred_fallthru
      _
    %v60 = vld [vmem:[#allocation5] sm:$0xff]
    %v61 = vld [vmem:[#allocation5 + $0x8] sm:$0xff]
    %v62 = vld [vmem:[#allocation2] sm:$0x3]
    %v63 = vld [vmem:[%s3] sm:$0x1]
    %v64 = vld [vmem:[#allocation7] sm:$0xff]
    %v65 = vld [vmem:[#allocation7 + $0x8] sm:$0xff]
    %v66 = vld [vmem:[#allocation7 + $0x10] sm:$0xff]
    %v67 = vld [vmem:[#allocation7 + $0x18] sm:$0xff]
    %v70 = vunpack.c.l.s4 1966171168
    %v71 = vunpack.c.0.s8 %v70
    %v72 = vlaneseq
    %v73 = vshrl.u32 %v72, 7
    %v74 = vsub.s32 %v71, %v73
    %v75 = vrot.slane %v62, %v74
    %v76 = vcombine.high %v75, %v75
    %v78 = vunpack.c.l.s4 1966171168
    %v79 = vunpack.c.0.s8 %v78
    %v80 = vlaneseq
    %v81 = vshrl.u32 %v80, 7
    %v82 = vsub.s32 %v79, %v81
    %v83 = vrot.slane %v75, %v82
    %v85 = vunpack.c.l.s4 1966171168
    %v86 = vunpack.c.0.s8 %v85
    %v87 = vlaneseq
    %v88 = vshrl.u32 %v87, 7
    %v89 = vsub.s32 %v86, %v88
    %v90 = vrot.slane %v76, %v89
    %v91 = vlaneseq
    %v92 = vshrl.u32 %v91, 7
    %v93 = vsub.s32 0, %v92
    %v94 = vrot.slane %v83, %v93
    %v95 = vlaneseq
    %v96 = vshrl.u32 %v95, 7
    %v97 = vsub.s32 0, %v96
    %v98 = vrot.slane %v90, %v97
    %vm101 = vcmask 261120
    %v103 = vsel %vm101, %v60, 0
    %v106 = vsel %vm101, %v61, 0
    %108 = vmatprep.subr.mxu0 0.0
    %109 = vmatpush1.msra.mxu0 %v64
    %110 = vmatprep.subr.mxu0 0.0
    %111 = vmatpush1.msra.mxu0 %v65
    %112 = vmatprep.subr.mxu0 0.0
    %113 = vmatpush1.msra.mxu0 %v66
    %114 = vmatprep.subr.mxu0 0.0
    %115 = vmatpush1.msra.mxu0 %v67
    %116 = vmatprep.subr.mxu0 0.0
    %117 = vmatpush1.msra.mxu0 0.0
    %118 = vmatprep.subr.mxu0 0.0
    %119 = vmatpush1.msra.mxu0 0.0
    %120 = vmatprep.subr.mxu0 0.0
    %121 = vmatpush1.msra.mxu0 0.0
    %122 = vmatprep.subr.mxu0 0.0
    %123 = vmatpush1.msra.mxu0 0.0
    %124 = vmatprep.subr.mxu0 0.0
    %125 = vmatpush1.msra.mxu0 0.0
    %126 = vmatprep.subr.mxu0 0.0
    %127 = vmatpush1.msra.mxu0 0.0
    %128 = vmatprep.subr.mxu0 0.0
    %129 = vmatpush1.msra.mxu0 0.0
    %130 = vmatprep.subr.mxu0 0.0
    %131 = vmatpush1.msra.mxu0 0.0
    %132 = vmatprep.subr.mxu0 0.0
    %133 = vmatpush1.msra.mxu0 0.0
    %134 = vmatprep.subr.mxu0 0.0
    %135 = vmatpush1.msra.mxu0 0.0
    %136 = vmatprep.subr.mxu0 0.0
    %137 = vmatpush1.msra.mxu0 0.0
    %138 = vmatprep.subr.mxu0 0.0
    %139 = vmatpush1.msra.mxu0 0.0
    %140 = vmatprep.subr.mxu0 0.0
    %141 = vmatpush1.msra.mxu0 0.0
    %142 = vmatprep.subr.mxu0 0.0
    %143 = vmatpush1.msra.mxu0 0.0
    %144 = vmatprep.subr.mxu0 0.0
    %145 = vmatpush1.msra.mxu0 0.0
    %146 = vmatprep.subr.mxu0 0.0
    %147 = vmatpush1.msra.mxu0 0.0
    %148 = vmatprep.subr.mxu0 0.0
    %149 = vmatpush1.msra.mxu0 0.0
    %150 = vmatprep.subr.mxu0 0.0
    %151 = vmatpush1.msra.mxu0 0.0
    %152 = vmatprep.subr.mxu0 0.0
    %153 = vmatpush1.msra.mxu0 0.0
    %154 = vmatprep.subr.mxu0 0.0
    %155 = vmatpush1.msra.mxu0 0.0
    %156 = vmatprep.subr.mxu0 0.0
    %157 = vmatpush1.msra.mxu0 0.0
    %158 = vmatprep.subr.mxu0 0.0
    %159 = vmatpush1.msra.mxu0 0.0
    %160 = vmatprep.subr.mxu0 0.0
    %161 = vmatpush1.msra.mxu0 0.0
    %162 = vmatprep.subr.mxu0 0.0
    %163 = vmatpush1.msra.mxu0 0.0
    %164 = vmatprep.subr.mxu0 0.0
    %165 = vmatpush1.msra.mxu0 0.0
    %166 = vmatprep.subr.mxu0 0.0
    %167 = vmatpush1.msra.mxu0 0.0
    %168 = vmatprep.subr.mxu0 0.0
    %169 = vmatpush1.msra.mxu0 0.0
    %170 = vmatprep.subr.mxu0 0.0
    %171 = vmatpush1.msra.mxu0 0.0
    %172 = vmatprep.mubr.f32.mxu0 0.0
    %173 = vmatmul.mubr.f32.gmra.mrb[0].mxu0 %v103
    %v174 = vpop.f32.mrb[0].mxu0
    %v175 = vadd.f32 %v94, %v174
    %v176 = vpop.f32.mrb[0].mxu0
    %177 = vmatprep.mubr.f32.mxu0 0.0
    %178 = vmatmul.mubr.f32.gmra.mrb[0].mxu0 %v106
    %v179 = vpop.f32.mrb[0].mxu0
    %v180 = vadd.f32 %v98, %v179
    %v181 = vpop.f32.mrb[0].mxu0
    %182 = vdwg.mxu0
    %v183 = vtanh.pop %v175
    %v184 = vtanh.pop %v180
    %v186 = vlaneseq
    %v187 = vshrl.u32 %v186, 7
    %v188 = vsub.s32 0, %v187
    %v189 = vrot.slane %v63, %v188
    %v191 = vmul.f32 %v183, %v189
    %v192 = vmul.f32 %v184, %v189
    %v193 = vsel %vm101, %v191, 0.0
    %194 = vadd.xlane.f32.xlu0 %v193
    %v195 = vpop.xlane.xlu0 %194
    %v196 = vsel %vm101, %v192, 0.0
    %197 = vadd.xlane.f32.xlu0 %v196
    %v198 = vpop.xlane.xlu0 %197
    %v201 = vlaneseq
    %v202 = vand.u32 %v201, 127
    %v203 = vlaneseq
    %v204 = vshrl.u32 %v203, 7
    %v205 = vsub.s32 %v202, %v204
    %v206 = vrot.slane %v195, %v205
    %v207 = vlaneseq
    %v208 = vshrl.u32 %v207, 7
    %v209 = vsub.s32 %v202, %v208
    %v210 = vrot.slane %v198, %v209
    %vm211 = vcmask 1041409
    %v212 = vsel %vm211, %v210, %v206
    %vm214 = vcmask 58368
    %v215 = vsel %vm214, %v212, -inf
    %216 = vmax.xlane.f32.xlu0 %v215
    %v217 = vpop.xlane.xlu0 %216
    %v219 = vlaneseq
    %v220 = vshrl.u32 %v219, 7
    %v221 = vsub.s32 0, %v220
    %v222 = vrot.slane %v217, %v221
    %v223 = vlaneseq
    %v224 = vshrl.u32 %v223, 7
    %v225 = vsub.s32 1, %v224
    %v226 = vrot.slane %v217, %v225
    %v229 = vsub.f32 %v195, %v222
    %v230 = vsub.f32 %v198, %v226
    %v231 = vmul.f32 %v229, 1.442695
    %v232 = vpow.pop %v231
    %v233 = vmul.f32 %v230, 1.442695
    %v234 = vpow.pop %v233
    %237 = vset.pattern.permute.xlu0 0
    %238 = vperm.xlu0 %237, %v232
    %v239 = vpop.permute.xlu0 %238
    %240 = vset.pattern.permute.xlu0 0
    %241 = vperm.xlu0 %240, %v234
    %v242 = vpop.permute.xlu0 %241
    %v243 = vlaneseq
    %v244 = vshrl.u32 %v243, 7
    %v245 = vsub.s32 %v202, %v244
    %v246 = vrot.slane %v239, %v245
    %v247 = vlaneseq
    %v248 = vshrl.u32 %v247, 7
    %v249 = vsub.s32 %v202, %v248
    %v250 = vrot.slane %v242, %v249
    %v251 = vsel %vm211, %v250, %v246
    %v253 = vsel %vm214, %v251, 0.0
    %254 = vadd.xlane.f32.xlu0 %v253
    %v255 = vpop.xlane.xlu0 %254
    %v256 = vrcp.pop %v255
    %v258 = vlaneseq
    %v259 = vshrl.u32 %v258, 7
    %v260 = vsub.s32 0, %v259
    %v261 = vrot.slane %v256, %v260
    %v262 = vlaneseq
    %v263 = vshrl.u32 %v262, 7
    %v264 = vsub.s32 1, %v263
    %v265 = vrot.slane %v256, %v264
    %v268 = vmul.f32 %v232, %v261
    %v269 = vmul.f32 %v234, %v265
    %271 = vset.pattern.permute.xlu0 0
    %272 = vperm.xlu0 %271, %v268
    %v273 = vpop.permute.xlu0 %272
    %276 = vset.pattern.permute.xlu0 0
    %277 = vperm.xlu0 %276, %v269
    %v278 = vpop.permute.xlu0 %277
    %v280 = vmul.f32 %v273, %v60
    %v281 = vmul.f32 %v278, %v61
    %v282 = vsel %vm101, %v280, 0.0
    %v283 = vrot.slane %v282, 4
    %v284 = vadd.f32 %v282, %v283
    %v285 = vrot.slane %v284, 2
    %v286 = vadd.f32 %v284, %v285
    %v287 = vrot.slane %v286, 1
    %v288 = vadd.f32 %v286, %v287
    %v289 = vsel %vm101, %v281, 0.0
    %v290 = vrot.slane %v289, 4
    %v291 = vadd.f32 %v289, %v290
    %v292 = vrot.slane %v291, 2
    %v293 = vadd.f32 %v291, %v292
    %v294 = vrot.slane %v293, 1
    %v295 = vadd.f32 %v293, %v294
    %v298 = vsel %vm211, %v295, %v288
    %vm300 = vcmask 254976
    %301 = vst.msk [vmem:[#allocation8] sm:$0x3] %vm300, %v298
    %v302 = vlaneseq
    %v303 = vshrl.u32 %v302, 7
    %v304 = vsub.s32 %v202, %v303
    %v305 = vrot.slane %v273, %v304
    %v306 = vlaneseq
    %v307 = vshrl.u32 %v306, 7
    %v308 = vsub.s32 %v202, %v307
    %v309 = vrot.slane %v278, %v308
    %v310 = vsel %vm211, %v309, %v305
    %312 = vst.msk [vmem:[#allocation9] sm:$0x3] %vm214, %v310
    // Predicated region
    $region30: #{tpu_custom_call.1} parent=1 // pred_check
      _
    $region31: #{tpu_custom_call.1} parent=1 // pred_check_branch
      %314 = sbr.rel (0) target = $region33
    $region32: #{tpu_custom_call.1} parent=1 // pred_region
      %s316 = ssub.s32 32, 32
      %317 = vsyncadd [#allocation4], %s316
      %s319 = sshll.u32 [#allocation8], 4
      %s320 = int_to_ptr.vmem [resolvable:$true] %s319
      %322 = dma.vmem_to_hbm [thread:$0]  %s320, 32, %s4, [#allocation4]
    $region33: #{tpu_custom_call.1} parent=1 // pred_fallthru
      _
    // Predicated region
    $region34: #{tpu_custom_call.1} parent=1 // pred_check
      _
    $region35: #{tpu_custom_call.1} parent=1 // pred_check_branch
      %324 = sbr.rel (0) target = $region37
    $region36: #{tpu_custom_call.1} parent=1 // pred_region
      %s326 = ssub.s32 32, 32
      %327 = vsyncadd [#allocation10], %s326
      %s329 = sshll.u32 [#allocation9], 4
      %s330 = int_to_ptr.vmem [resolvable:$true] %s329
      %332 = dma.vmem_to_hbm [thread:$0]  %s330, 32, %s5, [#allocation10]
    $region37: #{tpu_custom_call.1} parent=1 // pred_fallthru
      _
    // Predicated region
    $region38: #{tpu_custom_call.1} parent=1 // pred_check
      _
    $region39: #{tpu_custom_call.1} parent=1 // pred_check_branch
      %334 = sbr.rel (0) target = $region41
    $region40: #{tpu_custom_call.1} parent=1 // pred_region
      %335 = dma.done [#allocation4], 32
    $region41: #{tpu_custom_call.1} parent=1 // pred_fallthru
      _
    // Predicated region
    $region42: #{tpu_custom_call.1} parent=1 // pred_check
      _
    $region43: #{tpu_custom_call.1} parent=1 // pred_check_branch
      %337 = sbr.rel (0) target = $region45
    $region44: #{tpu_custom_call.1} parent=1 // pred_region
      %338 = dma.done [#allocation10], 32
    $region45: #{tpu_custom_call.1} parent=1 // pred_fallthru
      _
    %339 = vsyncpa [#allocation3], 1
    %340 = vsyncpa [#allocation6], 1
    %341 = vsyncpa [#allocation4], 1
    %342 = vsyncpa [#allocation10], 1

</llo_original>
